<compile_context>
chip_gen: v7x
topology: tpu7x:2x2x1
jax: 0.10.0
libtpu: 0.0.40
codegen_flags: <defaults>
</compile_context>

<pallas_src>
import functools
import math

import jax
import jax.numpy as jnp
from jax import lax
from jax.experimental import pallas as pl
from jax.experimental.pallas import tpu as pltpu

_MAX_TILE_PX = 131072   # lanes per grid step (upper cap; VMEM budget re-derives)
_CHUNK_PX = 512         # lanes per in-kernel compute chunk (stays in vregs)


def _vmem_capacity_bytes():
    try:
        cap = getattr(pltpu.get_tpu_info(), "vmem_capacity_bytes", None)
        if cap:
            return int(cap)
    except Exception:
        pass
    return 64 * 1024 * 1024   # conservative default (v7x per-TC capacity)


def _roundup(x, m):
    return ((x + m - 1) // m) * m


def _choose_tile_px(p128, c, in_bytes, budget):
    """Largest lane count per step fitting the VMEM budget; prefers a tile
    that evenly divides the (128-rounded) pixel count so no pad is needed."""
    sub_pack = max(8, 32 // max(in_bytes, 1))   # 8 for f32, 16 for bf16, ...
    c_pad_in = _roundup(c, sub_pack)            # sublane padding of input tiles
    c_pad_f32 = _roundup(c, 8)
    # Fixed-ish costs: ~12 chunk-sized f32 temporaries, 3 double-buffered
    # (C,128) output accumulators, plus slack for compiler temporaries.
    headroom = (12 * c_pad_f32 * _CHUNK_PX * 4
                + 3 * 2 * c_pad_f32 * 128 * 4
                + (2 << 20))
    per_px = 2 * 2 * c_pad_in * in_bytes        # 2 inputs x 2 pipeline buffers
    t = max(128, (budget - headroom) // per_px)
    t = min(int(t), _MAX_TILE_PX, p128)
    t = max(128, (t // 128) * 128)
    # Snap down to a divisor of p128 (no wrapper pad, no ragged tail) if that
    # loses less than 2x of the budgeted tile size.
    k = p128 // 128
    best = 1
    for d in range(t // 128, 0, -1):
        if k % d == 0:
            best = d
            break
    if best * 128 * 2 >= t:
        t = best * 128
    return t


def _cag_loss_kernel(p_ref, t_ref, ce_ref, cnt_ref, bce_ref, *,
                     chunk_px, n_chunks, unroll):
    @pl.when(pl.program_id(2) == 0)
    def _():
        ce_ref[...] = jnp.zeros_like(ce_ref)
        cnt_ref[...] = jnp.zeros_like(cnt_ref)
        bce_ref[...] = jnp.zeros_like(bce_ref)

    n_fold = chunk_px // 128

    def fold128(x):                      # (C, chunk_px) -> (C, 128)
        acc = x[:, 0:128]
        for k in range(1, n_fold):       # lane-block-aligned pure VPU adds
            acc = acc + x[:, k * 128:(k + 1) * 128]
        return acc

    def body(i, carry):
        ce_a, cnt_a, bce_a = carry
        off = pl.multiple_of(i * chunk_px, chunk_px)
        p = p_ref[:, pl.ds(off, chunk_px)].astype(jnp.float32)   # (C, chunk)
        t = t_ref[:, pl.ds(off, chunk_px)].astype(jnp.float32)   # (C, chunk)

        # Soft-label cross entropy per pixel; class reduce on the short
        # sublane axis:  nll = lse * sum_c t  -  sum_c t * (p - max)
        m = jnp.max(p, axis=0, keepdims=True)                    # (1, chunk)
        z = p - m
        lse = jnp.log(jnp.sum(jnp.exp(z), axis=0, keepdims=True))
        nll = (lse * jnp.sum(t, axis=0, keepdims=True)
               - jnp.sum(t * z, axis=0, keepdims=True))          # (1, chunk)

        # Class membership exactly as the PyTorch reference: target[c] == 1.
        mask = (t == 1.0).astype(jnp.float32)                    # (C, chunk)

        # Numerically-stable BCE-with-logits per element.
        bce = (jnp.maximum(p, 0.0) - p * t
               + jnp.log(1.0 + jnp.exp(-jnp.abs(p))))

        return (ce_a + fold128(mask * nll),
                cnt_a + fold128(mask),
                bce_a + fold128(bce))

    zero = jnp.zeros(ce_ref.shape, jnp.float32)
    ce_a, cnt_a, bce_a = lax.fori_loop(0, n_chunks, body, (zero, zero, zero),
                                       unroll=unroll)
    ce_ref[...] += ce_a
    cnt_ref[...] += cnt_a
    bce_ref[...] += bce_a


def cag_segmenter_loss(pred, target):
    """pred, target: (B, C, H, W) arrays (f32 or bf16). Returns the scalar loss."""
    B, C, H, W = pred.shape
    P = H * W

    # Free (contiguous) reshape: NCHW -> (B, C, H*W); pixels end up lane-major.
    p = pred.reshape(B, C, P)
    t = target.reshape(B, C, P)

    in_bytes = jnp.dtype(pred.dtype).itemsize
    vmem_cap = _vmem_capacity_bytes()
    vmem_budget = int(0.4 * vmem_cap)

    p128 = _roundup(P, 128)
    tile_px = _choose_tile_px(p128, C, in_bytes, vmem_budget)
    n_tiles = pl.cdiv(p128, tile_px)

    # v7x has two TensorCores: guarantee >= 2 parallel grid units even when
    # B == 1 by splitting the pixel axis into an outer parallel axis.
    if B == 1 and n_tiles == 1 and p128 >= 256:
        tile_px = _roundup(pl.cdiv(p128, 2), 128)
        n_tiles = pl.cdiv(p128, tile_px)
    n_outer = 2 if (B == 1 and n_tiles >= 2) else 1
    n_inner = pl.cdiv(n_tiles, n_outer)
    p_pad = n_outer * n_inner * tile_px

    if p_pad != P:
        padw = ((0, 0), (0, 0), (0, p_pad - P))
        p = jnp.pad(p, padw)   # zero pad: no CE/count contribution, BCE = log 2
        t = jnp.pad(t, padw)

    chunk_px = _CHUNK_PX
    while tile_px % chunk_px:
        chunk_px //= 2
    n_chunks = tile_px // chunk_px
    unroll = 1
    for u in (8, 4, 2):
        if n_chunks % u == 0:
            unroll = u
            break

    kernel = functools.partial(_cag_loss_kernel, chunk_px=chunk_px,
                               n_chunks=n_chunks, unroll=unroll)

    out_shapes = tuple(jax.ShapeDtypeStruct((B, n_outer, C, 128), jnp.float32)
                       for _ in range(3))
    in_spec = pl.BlockSpec((None, C, tile_px),
                           lambda b, o, j: (b, 0, o * n_inner + j))
    out_spec = pl.BlockSpec((None, None, C, 128),
                            lambda b, o, j: (b, o, 0, 0))

    ce_part, cnt_part, bce_part = pl.pallas_call(
        kernel,
        out_shape=out_shapes,
        grid_spec=pltpu.PrefetchScalarGridSpec(
            num_scalar_prefetch=0,
            grid=(B, n_outer, n_inner),
            in_specs=[in_spec, in_spec],
            out_specs=(out_spec, out_spec, out_spec),
        ),
        compiler_params=pltpu.CompilerParams(
            dimension_semantics=("parallel", "parallel", "arbitrary"),
            vmem_limit_bytes=int(min(0.6 * vmem_cap, 100 * 2**20))),
    )(p, t)

    # Cheap finalization: fold the tiny (B, n_outer, C, 128) partials, subtract
    # the exact BCE contribution of the zero-padded pixels, then per-class
    # branch (mean CE over member pixels vs mean BCE over all real pixels).
    ce_num = jnp.sum(ce_part, axis=(0, 1, 3))      # (C,)
    cnt = jnp.sum(cnt_part, axis=(0, 1, 3))        # (C,)
    bce_sum = jnp.sum(bce_part, axis=(0, 1, 3))    # (C,)
    pad_px = p_pad - P
    if pad_px:
        bce_sum = bce_sum - jnp.float32(B * pad_px * math.log(2.0))
    n_px = jnp.float32(B * P)
    losses = jnp.where(cnt > 0,
                       ce_num / jnp.maximum(cnt, 1.0),
                       bce_sum / n_px)
    return jnp.sum(losses)


def _reference_loss(pred, target):
    """Pure-JAX reference mirroring the PyTorch forward, for verification."""
    B, C, H, W = pred.shape
    p = jnp.transpose(pred, (0, 2, 3, 1)).reshape(-1, C)
    t = jnp.transpose(target, (0, 2, 3, 1)).reshape(-1, C)
    log_sm = jax.nn.log_softmax(p, axis=-1)
    nll = -jnp.sum(t * log_sm, axis=-1)
    losses = []
    for c in range(C):
        member = t[:, c] == 1.0
        cnt = jnp.sum(member)
        ce = jnp.sum(jnp.where(member, nll, 0.0)) / jnp.maximum(cnt, 1)
        x, y = p[:, c], t[:, c]
        bce = jnp.mean(jnp.maximum(x, 0.0) - x * y
                       + jnp.log(1.0 + jnp.exp(-jnp.abs(x))))
        losses.append(jnp.where(cnt > 0, ce, bce))
    return jnp.sum(jnp.stack(losses))


# TODO(synk): backward()/cagrad_exact() rely on torch.autograd plus a host-side
# scipy.optimize.minimize QP solve; only the forward pass is implemented here.

if __name__ == "__main__":
    key = jax.random.PRNGKey(0)
    B, C, H, W = 2, 4, 16, 16
    k1, k2 = jax.random.split(key)
    pred = jax.random.normal(k1, (B, C, H, W), dtype=jnp.float32)

    # One-hot target over the first C-1 classes so the last class has no
    # member pixels and exercises the BCE-with-logits fallback branch.
    cls = jax.random.randint(k2, (B, H, W), 0, C - 1)
    target = jax.nn.one_hot(cls, C, dtype=jnp.float32)        # (B, H, W, C)
    target = jnp.transpose(target, (0, 3, 1, 2))              # -> NCHW

    out = jax.block_until_ready(cag_segmenter_loss(pred, target))
    ref = jax.block_until_ready(_reference_loss(pred, target))
    assert jnp.allclose(out, ref, rtol=1e-5, atol=1e-5), (out, ref)
    print("KERNEL_OK")
</pallas_src>

<mosaic_0001>
module attributes {stable_mosaic.version = 11 : i64} {
  func.func @_cag_loss_kernel(%arg0: i32, %arg1: i32, %arg2: i32, %arg3: memref<1x4x256xf32, #tpu.memory_space<vmem>>, %arg4: memref<1x4x256xf32, #tpu.memory_space<vmem>>, %arg5: memref<1x1x4x128xf32, #tpu.memory_space<vmem>>, %arg6: memref<1x1x4x128xf32, #tpu.memory_space<vmem>>, %arg7: memref<1x1x4x128xf32, #tpu.memory_space<vmem>>) attributes {dimension_semantics = [#tpu.dimension_semantics<parallel>, #tpu.dimension_semantics<parallel>, #tpu.dimension_semantics<arbitrary>], iteration_bounds = array<i64: 2, 1, 1>, scalar_prefetch = 0 : i64, scratch_operands = 0 : i64, tpu.core_type = #tpu.core_type<tc>, window_params = [{transform_indices = @transform_0, window_bounds = array<i64: 1, 4, 256>}, {transform_indices = @transform_1, window_bounds = array<i64: 1, 4, 256>}, {transform_indices = @transform_2, window_bounds = array<i64: 1, 1, 4, 128>}, {transform_indices = @transform_3, window_bounds = array<i64: 1, 1, 4, 128>}, {transform_indices = @transform_4, window_bounds = array<i64: 1, 1, 4, 128>}]} {
    %c0_i32 = arith.constant 0 : i32
    %0 = arith.cmpi eq, %arg2, %c0_i32 : i32
    %1 = arith.extui %0 : i1 to i32
    %c0_i32_0 = arith.constant 0 : i32
    %2 = arith.cmpi ne, %1, %c0_i32_0 : i32
    scf.if %2 {
      %cst_37 = arith.constant 0.000000e+00 : f32
      %75 = vector.broadcast %cst_37 : f32 to vector<4x128xf32>
      %c0_38 = arith.constant 0 : index
      %c0_39 = arith.constant 0 : index
      %c0_40 = arith.constant 0 : index
      %c0_41 = arith.constant 0 : index
      %76 = vector.load %arg5[%c0_38, %c0_39, %c0_40, %c0_41] : memref<1x1x4x128xf32, #tpu.memory_space<vmem>>, vector<1x1x4x128xf32>
      %77 = vector.shape_cast %76 : vector<1x1x4x128xf32> to vector<4x128xf32>
      %78 = vector.shape_cast %75 : vector<4x128xf32> to vector<1x1x4x128xf32>
      tpu.vector_store %arg5[%c0_38, %c0_39, %c0_40, %c0_41], %78 {strides = array<i32>} : memref<1x1x4x128xf32, #tpu.memory_space<vmem>>, vector<1x1x4x128xf32>,
      %cst_42 = arith.constant 0.000000e+00 : f32
      %79 = vector.broadcast %cst_42 : f32 to vector<4x128xf32>
      %c0_43 = arith.constant 0 : index
      %c0_44 = arith.constant 0 : index
      %c0_45 = arith.constant 0 : index
      %c0_46 = arith.constant 0 : index
      %80 = vector.load %arg6[%c0_43, %c0_44, %c0_45, %c0_46] : memref<1x1x4x128xf32, #tpu.memory_space<vmem>>, vector<1x1x4x128xf32>
      %81 = vector.shape_cast %80 : vector<1x1x4x128xf32> to vector<4x128xf32>
      %82 = vector.shape_cast %79 : vector<4x128xf32> to vector<1x1x4x128xf32>
      tpu.vector_store %arg6[%c0_43, %c0_44, %c0_45, %c0_46], %82 {strides = array<i32>} : memref<1x1x4x128xf32, #tpu.memory_space<vmem>>, vector<1x1x4x128xf32>,
      %cst_47 = arith.constant 0.000000e+00 : f32
      %83 = vector.broadcast %cst_47 : f32 to vector<4x128xf32>
      %c0_48 = arith.constant 0 : index
      %c0_49 = arith.constant 0 : index
      %c0_50 = arith.constant 0 : index
      %c0_51 = arith.constant 0 : index
      %84 = vector.load %arg7[%c0_48, %c0_49, %c0_50, %c0_51] : memref<1x1x4x128xf32, #tpu.memory_space<vmem>>, vector<1x1x4x128xf32>
      %85 = vector.shape_cast %84 : vector<1x1x4x128xf32> to vector<4x128xf32>
      %86 = vector.shape_cast %83 : vector<4x128xf32> to vector<1x1x4x128xf32>
      tpu.vector_store %arg7[%c0_48, %c0_49, %c0_50, %c0_51], %86 {strides = array<i32>} : memref<1x1x4x128xf32, #tpu.memory_space<vmem>>, vector<1x1x4x128xf32>,
    } else {
    }
    %cst = arith.constant 0.000000e+00 : f32
    %3 = vector.broadcast %cst : f32 to vector<4x128xf32>
    %c0_i32_1 = arith.constant 0 : i32
    %c256_i32 = arith.constant 256 : i32
    %4 = arith.muli %c0_i32_1, %c256_i32 : i32
    %5 = tpu.assume_multiple %4, 256 : i32
    %c0 = arith.constant 0 : index
    %c0_2 = arith.constant 0 : index
    %6 = arith.index_cast %5 : i32 to index
    %7 = vector.load %arg3[%c0, %c0_2, %6] : memref<1x4x256xf32, #tpu.memory_space<vmem>>, vector<1x4x256xf32>
    %8 = vector.shape_cast %7 : vector<1x4x256xf32> to vector<4x256xf32>
    %c0_3 = arith.constant 0 : index
    %c0_4 = arith.constant 0 : index
    %9 = arith.index_cast %5 : i32 to index
    %10 = vector.load %arg4[%c0_3, %c0_4, %9] : memref<1x4x256xf32, #tpu.memory_space<vmem>>, vector<1x4x256xf32>
    %11 = vector.shape_cast %10 : vector<1x4x256xf32> to vector<4x256xf32>
    %cst_5 = arith.constant dense<0xFF800000> : vector<256xf32>
    %12 = vector.multi_reduction <maximumf>, %8, %cst_5 [0] : vector<4x256xf32> to vector<256xf32>
    %13 = vector.shape_cast %12 : vector<256xf32> to vector<1x256xf32>
    %14 = vector.broadcast %13 : vector<1x256xf32> to vector<4x256xf32>
    %15 = arith.subf %8, %14 : vector<4x256xf32>
    %16 = math.exp %15 : vector<4x256xf32>
    %cst_6 = arith.constant dense<0.000000e+00> : vector<256xf32>
    %17 = vector.multi_reduction <add>, %16, %cst_6 [0] : vector<4x256xf32> to vector<256xf32>
    %18 = vector.shape_cast %17 : vector<256xf32> to vector<1x256xf32>
    %19 = math.log %18 : vector<1x256xf32>
    %cst_7 = arith.constant dense<0.000000e+00> : vector<256xf32>
    %20 = vector.multi_reduction <add>, %11, %cst_7 [0] : vector<4x256xf32> to vector<256xf32>
    %21 = vector.shape_cast %20 : vector<256xf32> to vector<1x256xf32>
    %22 = arith.mulf %19, %21 : vector<1x256xf32>
    %23 = arith.mulf %11, %15 : vector<4x256xf32>
    %cst_8 = arith.constant dense<0.000000e+00> : vector<256xf32>
    %24 = vector.multi_reduction <add>, %23, %cst_8 [0] : vector<4x256xf32> to vector<256xf32>
    %25 = vector.shape_cast %24 : vector<256xf32> to vector<1x256xf32>
    %26 = arith.subf %22, %25 : vector<1x256xf32>
    %cst_9 = arith.constant 1.000000e+00 : f32
    %27 = vector.broadcast %cst_9 : f32 to vector<4x256xf32>
    %28 = arith.cmpf oeq, %11, %27 : vector<4x256xf32>
    %29 = arith.extui %28 : vector<4x256xi1> to vector<4x256xi32>
    %30 = arith.sitofp %29 : vector<4x256xi32> to vector<4x256xf32>
    %cst_10 = arith.constant 0.000000e+00 : f32
    %31 = vector.broadcast %cst_10 : f32 to vector<4x256xf32>
    %32 = arith.maximumf %8, %31 : vector<4x256xf32>
    %33 = arith.mulf %8, %11 : vector<4x256xf32>
    %34 = arith.subf %32, %33 : vector<4x256xf32>
    %35 = math.absf %8 : vector<4x256xf32>
    %cst_11 = arith.constant 0.000000e+00 : f32
    %36 = vector.broadcast %cst_11 : f32 to vector<4x256xf32>
    %37 = arith.subf %36, %35 : vector<4x256xf32>
    %38 = math.exp %37 : vector<4x256xf32>
    %cst_12 = arith.constant 1.000000e+00 : f32
    %39 = vector.broadcast %cst_12 : f32 to vector<4x256xf32>
    %40 = arith.addf %39, %38 : vector<4x256xf32>
    %41 = math.log %40 : vector<4x256xf32>
    %42 = arith.addf %34, %41 : vector<4x256xf32>
    %43 = vector.broadcast %26 : vector<1x256xf32> to vector<4x256xf32>
    %44 = arith.mulf %30, %43 : vector<4x256xf32>
    %45 = vector.extract_strided_slice %44 {offsets = [0, 0], sizes = [4, 128], strides = [1, 1]} : vector<4x256xf32> to vector<4x128xf32>
    %46 = vector.extract_strided_slice %44 {offsets = [0, 128], sizes = [4, 128], strides = [1, 1]} : vector<4x256xf32> to vector<4x128xf32>
    %47 = arith.addf %45, %46 : vector<4x128xf32>
    %48 = arith.addf %3, %47 : vector<4x128xf32>
    %49 = vector.extract_strided_slice %30 {offsets = [0, 0], sizes = [4, 128], strides = [1, 1]} : vector<4x256xf32> to vector<4x128xf32>
    %50 = vector.extract_strided_slice %30 {offsets = [0, 128], sizes = [4, 128], strides = [1, 1]} : vector<4x256xf32> to vector<4x128xf32>
    %51 = arith.addf %49, %50 : vector<4x128xf32>
    %52 = arith.addf %3, %51 : vector<4x128xf32>
    %53 = vector.extract_strided_slice %42 {offsets = [0, 0], sizes = [4, 128], strides = [1, 1]} : vector<4x256xf32> to vector<4x128xf32>
    %54 = vector.extract_strided_slice %42 {offsets = [0, 128], sizes = [4, 128], strides = [1, 1]} : vector<4x256xf32> to vector<4x128xf32>
    %55 = arith.addf %53, %54 : vector<4x128xf32>
    %56 = arith.addf %3, %55 : vector<4x128xf32>
    %c1_i32 = arith.constant 1 : i32
    %c0_13 = arith.constant 0 : index
    %c0_14 = arith.constant 0 : index
    %c0_15 = arith.constant 0 : index
    %c0_16 = arith.constant 0 : index
    %57 = vector.load %arg5[%c0_13, %c0_14, %c0_15, %c0_16] : memref<1x1x4x128xf32, #tpu.memory_space<vmem>>, vector<1x1x4x128xf32>
    %58 = vector.shape_cast %57 : vector<1x1x4x128xf32> to vector<4x128xf32>
    %59 = arith.addf %58, %48 : vector<4x128xf32>
    %c0_17 = arith.constant 0 : index
    %c0_18 = arith.constant 0 : index
    %c0_19 = arith.constant 0 : index
    %c0_20 = arith.constant 0 : index
    %60 = vector.load %arg5[%c0_17, %c0_18, %c0_19, %c0_20] : memref<1x1x4x128xf32, #tpu.memory_space<vmem>>, vector<1x1x4x128xf32>
    %61 = vector.shape_cast %60 : vector<1x1x4x128xf32> to vector<4x128xf32>
    %62 = vector.shape_cast %59 : vector<4x128xf32> to vector<1x1x4x128xf32>
    tpu.vector_store %arg5[%c0_17, %c0_18, %c0_19, %c0_20], %62 {strides = array<i32>} : memref<1x1x4x128xf32, #tpu.memory_space<vmem>>, vector<1x1x4x128xf32>,
    %c0_21 = arith.constant 0 : index
    %c0_22 = arith.constant 0 : index
    %c0_23 = arith.constant 0 : index
    %c0_24 = arith.constant 0 : index
    %63 = vector.load %arg6[%c0_21, %c0_22, %c0_23, %c0_24] : memref<1x1x4x128xf32, #tpu.memory_space<vmem>>, vector<1x1x4x128xf32>
    %64 = vector.shape_cast %63 : vector<1x1x4x128xf32> to vector<4x128xf32>
    %65 = arith.addf %64, %52 : vector<4x128xf32>
    %c0_25 = arith.constant 0 : index
    %c0_26 = arith.constant 0 : index
    %c0_27 = arith.constant 0 : index
    %c0_28 = arith.constant 0 : index
    %66 = vector.load %arg6[%c0_25, %c0_26, %c0_27, %c0_28] : memref<1x1x4x128xf32, #tpu.memory_space<vmem>>, vector<1x1x4x128xf32>
    %67 = vector.shape_cast %66 : vector<1x1x4x128xf32> to vector<4x128xf32>
    %68 = vector.shape_cast %65 : vector<4x128xf32> to vector<1x1x4x128xf32>
    tpu.vector_store %arg6[%c0_25, %c0_26, %c0_27, %c0_28], %68 {strides = array<i32>} : memref<1x1x4x128xf32, #tpu.memory_space<vmem>>, vector<1x1x4x128xf32>,
    %c0_29 = arith.constant 0 : index
    %c0_30 = arith.constant 0 : index
    %c0_31 = arith.constant 0 : index
    %c0_32 = arith.constant 0 : index
    %69 = vector.load %arg7[%c0_29, %c0_30, %c0_31, %c0_32] : memref<1x1x4x128xf32, #tpu.memory_space<vmem>>, vector<1x1x4x128xf32>
    %70 = vector.shape_cast %69 : vector<1x1x4x128xf32> to vector<4x128xf32>
    %71 = arith.addf %70, %56 : vector<4x128xf32>
    %c0_33 = arith.constant 0 : index
    %c0_34 = arith.constant 0 : index
    %c0_35 = arith.constant 0 : index
    %c0_36 = arith.constant 0 : index
    %72 = vector.load %arg7[%c0_33, %c0_34, %c0_35, %c0_36] : memref<1x1x4x128xf32, #tpu.memory_space<vmem>>, vector<1x1x4x128xf32>
    %73 = vector.shape_cast %72 : vector<1x1x4x128xf32> to vector<4x128xf32>
    %74 = vector.shape_cast %71 : vector<4x128xf32> to vector<1x1x4x128xf32>
    tpu.vector_store %arg7[%c0_33, %c0_34, %c0_35, %c0_36], %74 {strides = array<i32>} : memref<1x1x4x128xf32, #tpu.memory_space<vmem>>, vector<1x1x4x128xf32>,
    return
  }
  func.func @transform_0(%arg0: i32, %arg1: i32, %arg2: i32) -> (i32, i32, i32) {
    %c1_i32 = arith.constant 1 : i32
    %0 = arith.muli %arg1, %c1_i32 : i32
    %1 = arith.addi %0, %arg2 : i32
    %c0_i32 = arith.constant 0 : i32
    %c0_i32_0 = arith.constant 0 : i32
    return %arg0, %c0_i32, %1 : i32, i32, i32
  }
  func.func @transform_1(%arg0: i32, %arg1: i32, %arg2: i32) -> (i32, i32, i32) {
    %c1_i32 = arith.constant 1 : i32
    %0 = arith.muli %arg1, %c1_i32 : i32
    %1 = arith.addi %0, %arg2 : i32
    %c0_i32 = arith.constant 0 : i32
    %c0_i32_0 = arith.constant 0 : i32
    return %arg0, %c0_i32, %1 : i32, i32, i32
  }
  func.func @transform_2(%arg0: i32, %arg1: i32, %arg2: i32) -> (i32, i32, i32, i32) {
    %c0_i32 = arith.constant 0 : i32
    %c0_i32_0 = arith.constant 0 : i32
    %c0_i32_1 = arith.constant 0 : i32
    return %arg0, %arg1, %c0_i32, %c0_i32_0 : i32, i32, i32, i32
  }
  func.func @transform_3(%arg0: i32, %arg1: i32, %arg2: i32) -> (i32, i32, i32, i32) {
    %c0_i32 = arith.constant 0 : i32
    %c0_i32_0 = arith.constant 0 : i32
    %c0_i32_1 = arith.constant 0 : i32
    return %arg0, %arg1, %c0_i32, %c0_i32_0 : i32, i32, i32, i32
  }
  func.func @transform_4(%arg0: i32, %arg1: i32, %arg2: i32) -> (i32, i32, i32, i32) {
    %c0_i32 = arith.constant 0 : i32
    %c0_i32_0 = arith.constant 0 : i32
    %c0_i32_1 = arith.constant 0 : i32
    return %arg0, %arg1, %c0_i32, %c0_i32_0 : i32, i32, i32, i32
  }
}

</mosaic_0001>

<llo_original>
// kernel: tpu_custom_call.1
$region0: #{tpu_custom_call.1}
  #allocation0 [shape = 'u32[]', space=smem, size = 0x4, offset = 0x4, fixed_abs, tag = 'smem constant byte address 0x4 - core index']
  #allocation1 [shape = 'u32[144,128]{1,0:T(1,128)}', space=vmem, size = 0x12000, scoped, tag = 'internal scratch']
  %s0 = inlined_call_operand.hbm [shape: f32[2,4,256], index: 0, kind: input, shape index: {}]
  %s1 = inlined_call_operand.hbm [shape: f32[2,4,256], index: 1, kind: input, shape index: {}]
  %s2 = inlined_call_operand.hbm [shape: f32[2,1,4,128], index: 2, kind: output, shape index: {0}]
  %s3 = inlined_call_operand.hbm [shape: f32[2,1,4,128], index: 3, kind: output, shape index: {1}]
  %s4 = inlined_call_operand.hbm [shape: f32[2,1,4,128], index: 4, kind: output, shape index: {2}]
  %5 = xla_tuple %s2, %s3, %s4
  %s6 = sld [smem:[#allocation0]]
  $region69: #{tpu_custom_call.1} parent=0
    _
  %s8 = ssub.s32 1, %s6
  %s9 = scalar_select 0, %s8, %s6
  $region1: #{tpu_custom_call.1} parent=0
    #allocation2 [shape = 'u8[8192]{0}', space=vmem, size = 0x2000, scoped, tag = 'input window, operand 0']
    #allocation3 [shape = 's32[2]{0}', space=sflag, size = 0x8, scoped, tag = 'scoped memory for tpu_custom_call.1']
    #allocation4 [shape = 's32[2]{0}', space=sflag, size = 0x8, scoped, tag = 'scoped memory for tpu_custom_call.1']
    #allocation5 [shape = 'u8[8192]{0}', space=vmem, size = 0x2000, scoped, tag = 'input window, operand 1']
    #allocation6 [shape = 's32[2]{0}', space=sflag, size = 0x8, scoped, tag = 'scoped memory for tpu_custom_call.1']
    #allocation7 [shape = 'u8[4096]{0}', space=vmem, size = 0x1000, scoped, tag = 'output window, operand 0']
    #allocation8 [shape = 'u8[4096]{0}', space=vmem, size = 0x1000, scoped, tag = 'output window, operand 1']
    #allocation9 [shape = 's32[2]{0}', space=sflag, size = 0x8, scoped, tag = 'scoped memory for tpu_custom_call.1']
    #allocation10 [shape = 'u8[4096]{0}', space=vmem, size = 0x1000, scoped, tag = 'output window, operand 2']
    %10 = vsyncpa [#allocation3], 0
    %s11 = scalar_lea.sflag [#allocation3], 1
    %12 = vsyncpa %s11, 0
    %13 = vsyncpa [#allocation6], 0
    %s14 = scalar_lea.sflag [#allocation6], 1
    %15 = vsyncpa %s14, 0
    %16 = vsyncpa [#allocation4], 0
    %s17 = scalar_lea.sflag [#allocation4], 1
    %18 = vsyncpa %s17, 0
    %19 = vsyncpa [#allocation9], 0
    %s20 = scalar_lea.sflag [#allocation9], 1
    %21 = vsyncpa %s20, 0
    loop: start=0, step=1, limit=4
    $region2: #{tpu_custom_call.1} parent=1 // loop_pre_header
      _
    $region3: #{tpu_custom_call.1} parent=1 // loop_header
      %s23 = sphi 0, %s27
      %p24 = scmp.ge.s32.totalorder %s23, 4
      %s30 = sphi 0, %s49
      %s31 = sphi 0, %s45
      %s32 = sphi 0, %s41
      %s33 = sphi 0, %s30
      %s34 = sphi 0, %s31
      %s35 = sphi 0, %s32
      %s36 = sphi 0, %s33
      %s37 = sphi 0, %s34
      %s38 = sphi 0, %s35
      %s56 = sphi 0, %s58
      %s59 = sphi 0, %s56
      %s60 = sphi 0, %s59
      %s76 = sphi 0, %s60
      %s86 = sphi 0, %s88
      %s89 = sphi 0, %s86
      %s90 = sphi 0, %s89
      %s106 = sphi 0, %s90
      %s114 = sphi 0, %s116
      %s117 = sphi 0, %s114
      %s118 = sphi 0, %s117
      %s134 = sphi 0, %s118
      %s142 = sphi 0, %s144
      %s145 = sphi 0, %s142
      %s146 = sphi 0, %s145
      %s162 = sphi 0, %s146
      %s170 = sphi 0, %s172
      %s173 = sphi 0, %s170
      %s174 = sphi 0, %s173
      %s190 = sphi 0, %s174
    $region4: #{tpu_custom_call.1} parent=1 // loop_header_branch
      %26 = sbr.rel (%p24) target = $region8
    $region5: #{tpu_custom_call.1} parent=1 // loop_body
      %s28 = ssub.s32 %s23, 1
      %s29 = ssub.s32 %s23, 2
      %s39 = sadd.s32 1, %s32
      %p40 = scmp.ge.s32.totalorder %s39, 1
      %s41 = scalar_select %p40, 0, %s39
      %s42 = sadd.s32 1, %s31
      %s43 = scalar_select %p40, %s42, %s31
      %p44 = scmp.ge.s32.totalorder %s43, 1
      %s45 = scalar_select %p44, 0, %s43
      %s46 = sadd.s32 1, %s30
      %s47 = scalar_select %p44, %s46, %s30
      %p48 = scmp.ge.s32.totalorder %s47, 2
      %s49 = scalar_select %p48, 0, %s47
      %s50 = sadd.s32 %s31, %s32
      %s51 = sadd.s32 %s45, %s41
      %s52 = ssub.s32 %s30, %s49
      %s53 = ssub.s32 %s50, %s51
      %s54 = sor.u32 %s52, %s53
      %p55 = scmp.eq.s32.totalorder %s54, 0
      %s57 = sadd.s32 %s56, 1
      %s58 = scalar_select %p55, %s56, %s57
      %p61 = pneg %p55
      %p62 = scmp.eq.s32.totalorder %s23, 1
      %p63 = por %p61, %p62
      %p64 = scmp.ne.s32.totalorder %s56, %s59
      %p65 = scmp.eq.s32.totalorder %s23, 0
      %p66 = por %p64, %p65
      %p67 = scmp.ne.s32.totalorder %s56, %s59
      %p68 = scmp.eq.s32.totalorder %s28, 1
      %p69 = por %p67, %p68
      %p70 = scmp.ne.s32.totalorder %s59, %s60
      %p71 = scmp.eq.s32.totalorder %s28, 0
      %p72 = por %p70, %p71
      %p73 = scmp.ne.s32.totalorder %s59, %s60
      %p74 = scmp.eq.s32.totalorder %s29, 1
      %p75 = por %p73, %p74
      %p77 = scmp.ne.s32.totalorder %s60, %s76
      %p78 = scmp.eq.s32.totalorder %s29, 0
      %p79 = por %p77, %p78
      %s80 = sadd.s32 %s31, %s32
      %s81 = sadd.s32 %s45, %s41
      %s82 = ssub.s32 %s30, %s49
      %s83 = ssub.s32 %s80, %s81
      %s84 = sor.u32 %s82, %s83
      %p85 = scmp.eq.s32.totalorder %s84, 0
      %s87 = sadd.s32 %s86, 1
      %s88 = scalar_select %p85, %s86, %s87
      %p91 = pneg %p85
      %p92 = scmp.eq.s32.totalorder %s23, 1
      %p93 = por %p91, %p92
      %p94 = scmp.ne.s32.totalorder %s86, %s89
      %p95 = scmp.eq.s32.totalorder %s23, 0
      %p96 = por %p94, %p95
      %p97 = scmp.ne.s32.totalorder %s86, %s89
      %p98 = scmp.eq.s32.totalorder %s28, 1
      %p99 = por %p97, %p98
      %p100 = scmp.ne.s32.totalorder %s89, %s90
      %p101 = scmp.eq.s32.totalorder %s28, 0
      %p102 = por %p100, %p101
      %p103 = scmp.ne.s32.totalorder %s89, %s90
      %p104 = scmp.eq.s32.totalorder %s29, 1
      %p105 = por %p103, %p104
      %p107 = scmp.ne.s32.totalorder %s90, %s106
      %p108 = scmp.eq.s32.totalorder %s29, 0
      %p109 = por %p107, %p108
      %s110 = ssub.s32 %s30, %s49
      %s111 = ssub.s32 %s31, %s45
      %s112 = sor.u32 %s110, %s111
      %p113 = scmp.eq.s32.totalorder %s112, 0
      %s115 = sadd.s32 %s114, 1
      %s116 = scalar_select %p113, %s114, %s115
      %p119 = pneg %p113
      %p120 = scmp.eq.s32.totalorder %s23, 1
      %p121 = por %p119, %p120
      %p122 = scmp.ne.s32.totalorder %s114, %s117
      %p123 = scmp.eq.s32.totalorder %s23, 0
      %p124 = por %p122, %p123
      %p125 = scmp.ne.s32.totalorder %s114, %s117
      %p126 = scmp.eq.s32.totalorder %s28, 1
      %p127 = por %p125, %p126
      %p128 = scmp.ne.s32.totalorder %s117, %s118
      %p129 = scmp.eq.s32.totalorder %s28, 0
      %p130 = por %p128, %p129
      %p131 = scmp.ne.s32.totalorder %s117, %s118
      %p132 = scmp.eq.s32.totalorder %s29, 1
      %p133 = por %p131, %p132
      %p135 = scmp.ne.s32.totalorder %s118, %s134
      %p136 = scmp.eq.s32.totalorder %s29, 0
      %p137 = por %p135, %p136
      %s138 = ssub.s32 %s30, %s49
      %s139 = ssub.s32 %s31, %s45
      %s140 = sor.u32 %s138, %s139
      %p141 = scmp.eq.s32.totalorder %s140, 0
      %s143 = sadd.s32 %s142, 1
      %s144 = scalar_select %p141, %s142, %s143
      %p147 = pneg %p141
      %p148 = scmp.eq.s32.totalorder %s23, 1
      %p149 = por %p147, %p148
      %p150 = scmp.ne.s32.totalorder %s142, %s145
      %p151 = scmp.eq.s32.totalorder %s23, 0
      %p152 = por %p150, %p151
      %p153 = scmp.ne.s32.totalorder %s142, %s145
      %p154 = scmp.eq.s32.totalorder %s28, 1
      %p155 = por %p153, %p154
      %p156 = scmp.ne.s32.totalorder %s145, %s146
      %p157 = scmp.eq.s32.totalorder %s28, 0
      %p158 = por %p156, %p157
      %p159 = scmp.ne.s32.totalorder %s145, %s146
      %p160 = scmp.eq.s32.totalorder %s29, 1
      %p161 = por %p159, %p160
      %p163 = scmp.ne.s32.totalorder %s146, %s162
      %p164 = scmp.eq.s32.totalorder %s29, 0
      %p165 = por %p163, %p164
      %s166 = ssub.s32 %s30, %s49
      %s167 = ssub.s32 %s31, %s45
      %s168 = sor.u32 %s166, %s167
      %p169 = scmp.eq.s32.totalorder %s168, 0
      %s171 = sadd.s32 %s170, 1
      %s172 = scalar_select %p169, %s170, %s171
      %p175 = pneg %p169
      %p176 = scmp.eq.s32.totalorder %s23, 1
      %p177 = por %p175, %p176
      %p178 = scmp.ne.s32.totalorder %s170, %s173
      %p179 = scmp.eq.s32.totalorder %s23, 0
      %p180 = por %p178, %p179
      %p181 = scmp.ne.s32.totalorder %s170, %s173
      %p182 = scmp.eq.s32.totalorder %s28, 1
      %p183 = por %p181, %p182
      %p184 = scmp.ne.s32.totalorder %s173, %s174
      %p185 = scmp.eq.s32.totalorder %s28, 0
      %p186 = por %p184, %p185
      %p187 = scmp.ne.s32.totalorder %s173, %s174
      %p188 = scmp.eq.s32.totalorder %s29, 1
      %p189 = por %p187, %p188
      %p191 = scmp.ne.s32.totalorder %s174, %s190
      %p192 = scmp.eq.s32.totalorder %s29, 0
      %p193 = por %p191, %p192
      %p194 = scmp.le.s32.totalorder 1, %s23
      %p195 = scmp.lt.s32.totalorder %s23, 3
      %p196 = pnand %p194, %p195
      %p197 = pneg %p196
      // Predicated region
      $region9: #{tpu_custom_call.1} parent=5 // pred_check
        _
      $region10: #{tpu_custom_call.1} parent=5 // pred_check_branch
        %199 = sbr.rel (%p196) target = $region12
      $region11: #{tpu_custom_call.1} parent=5 // pred_region
        %s200 = ssub.s32 %s23, 1
      $region12: #{tpu_custom_call.1} parent=5 // pred_fallthru
        _
      %p201 = scmp.lt.s32.totalorder %s23, 2
      // Predicated region
      $region13: #{tpu_custom_call.1} parent=5 // pred_check
        %p202 = pneg %p201
      $region14: #{tpu_custom_call.1} parent=5 // pred_check_branch
        %204 = sbr.rel (%p202) target = $region16
      $region15: #{tpu_custom_call.1} parent=5 // pred_region
        // Predicated region
        $region17: #{tpu_custom_call.1} parent=15 // pred_check
          %p205 = pneg %p66
        $region18: #{tpu_custom_call.1} parent=15 // pred_check_branch
          %207 = sbr.rel (%p205) target = $region20
        $region19: #{tpu_custom_call.1} parent=15 // pred_region
          %s208 = sand.u32 %s56, 1
          %s209 = scalar_lea.sflag [#allocation3], %s208
          %s210 = sand.u32 %s56, 1
          %s211 = smul.addr %s210, 8
          %s212 = scalar_lea.vmem [#allocation2], %s211
          %s213 = sadd.s32 %s31, %s32
          %s214 = smul.u32 2, %s213
          %s216 = ssub.s32 128, 128
          %217 = vsyncadd %s209, %s216
          %s218 = smul.addr %s30, 2
          %s219 = sadd.s32 %s214, %s218
          %s220 = smul.addr %s219, 64
          %s221 = scalar_lea.hbm %s0, %s220
          %s223 = sshll.u32 %s212, 4
          %s224 = int_to_ptr.vmem [resolvable:$true] %s223
          %226 = dma.hbm_to_vmem [thread:$0]  %s221, 128, %s224, %s209
        $region20: #{tpu_custom_call.1} parent=15 // pred_fallthru
          _
        // Predicated region
        $region21: #{tpu_custom_call.1} parent=15 // pred_check
          %p227 = pneg %p96
        $region22: #{tpu_custom_call.1} parent=15 // pred_check_branch
          %229 = sbr.rel (%p227) target = $region24
        $region23: #{tpu_custom_call.1} parent=15 // pred_region
          %s230 = sand.u32 %s86, 1
          %s231 = scalar_lea.sflag [#allocation6], %s230
          %s232 = sand.u32 %s86, 1
          %s233 = smul.addr %s232, 8
          %s234 = scalar_lea.vmem [#allocation5], %s233
          %s235 = sadd.s32 %s31, %s32
          %s236 = smul.u32 2, %s235
          %s238 = ssub.s32 128, 128
          %239 = vsyncadd %s231, %s238
          %s240 = smul.addr %s30, 2
          %s241 = sadd.s32 %s236, %s240
          %s242 = smul.addr %s241, 64
          %s243 = scalar_lea.hbm %s1, %s242
          %s245 = sshll.u32 %s234, 4
          %s246 = int_to_ptr.vmem [resolvable:$true] %s245
          %248 = dma.hbm_to_vmem [thread:$0]  %s243, 128, %s246, %s231
        $region24: #{tpu_custom_call.1} parent=15 // pred_fallthru
          _
      $region16: #{tpu_custom_call.1} parent=5 // pred_fallthru
        _
      %p249 = scmp.le.s32.totalorder 1, %s23
      %p250 = scmp.lt.s32.totalorder %s23, 3
      %p251 = pnand %p249, %p250
      %p252 = pneg %p251
      // Predicated region
      $region25: #{tpu_custom_call.1} parent=5 // pred_check
        _
      $region26: #{tpu_custom_call.1} parent=5 // pred_check_branch
        %254 = sbr.rel (%p251) target = $region28
      $region27: #{tpu_custom_call.1} parent=5 // pred_region
        %s255 = ssub.s32 %s23, 1
        %s256 = sand.u32 %s59, 1
        %s257 = scalar_lea.sflag [#allocation3], %s256
        %s258 = sand.u32 %s59, 1
        %s259 = smul.addr %s258, 8
        %s260 = scalar_lea.vmem [#allocation2], %s259
        // Predicated region
        $region29: #{tpu_custom_call.1} parent=27 // pred_check
          %p261 = pneg %p72
        $region30: #{tpu_custom_call.1} parent=27 // pred_check_branch
          %263 = sbr.rel (%p261) target = $region32
        $region31: #{tpu_custom_call.1} parent=27 // pred_region
          %264 = dma.done %s257, 128
        $region32: #{tpu_custom_call.1} parent=27 // pred_fallthru
          _
        %s265 = sand.u32 %s89, 1
        %s266 = scalar_lea.sflag [#allocation6], %s265
        %s267 = sand.u32 %s89, 1
        %s268 = smul.addr %s267, 8
        %s269 = scalar_lea.vmem [#allocation5], %s268
        // Predicated region
        $region33: #{tpu_custom_call.1} parent=27 // pred_check
          %p270 = pneg %p102
        $region34: #{tpu_custom_call.1} parent=27 // pred_check_branch
          %272 = sbr.rel (%p270) target = $region36
        $region35: #{tpu_custom_call.1} parent=27 // pred_region
          %273 = dma.done %s266, 128
        $region36: #{tpu_custom_call.1} parent=27 // pred_fallthru
          _
        %s274 = sand.u32 %s59, 1
        %s275 = scalar_lea.sflag [#allocation3], %s274
        %s276 = sand.u32 %s59, 1
        %s277 = smul.addr %s276, 8
        %s278 = scalar_lea.vmem [#allocation2], %s277
        %p279 = pneg %p72
        %p280 = pneg %p69
        %s281 = sand.u32 %s89, 1
        %s282 = scalar_lea.sflag [#allocation6], %s281
        %s283 = sand.u32 %s89, 1
        %s284 = smul.addr %s283, 8
        %s285 = scalar_lea.vmem [#allocation5], %s284
        %p286 = pneg %p102
        %p287 = pneg %p99
        %p288 = pneg %p130
        %p289 = pneg %p127
        %s290 = sand.u32 %s117, 1
        %s291 = scalar_lea.sflag [#allocation4], %s290
        %s292 = sand.u32 %s117, 1
        %s293 = smul.addr %s292, 4
        %s294 = scalar_lea.vmem [#allocation7], %s293
        %p295 = pneg %p158
        %p296 = pneg %p155
        %s297 = sand.u32 %s28, 1
        %s298 = scalar_lea.sflag [#allocation9], %s297
        %s299 = sand.u32 %s145, 1
        %s300 = smul.addr %s299, 4
        %s301 = scalar_lea.vmem [#allocation8], %s300
        %p302 = pneg %p186
        %p303 = pneg %p183
        %s304 = sand.u32 %s28, 1
        %s305 = scalar_lea.sflag [#allocation9], %s304
        %s306 = sand.u32 %s173, 1
        %s307 = smul.addr %s306, 4
        %s308 = scalar_lea.vmem [#allocation10], %s307
        %s309 = sadd.s32 %s34, %s35
        %s310 = smul.u32 2, %s309
        %s311 = sadd.s32 %s34, %s35
        %s312 = smul.u32 2, %s311
        %p313 = scmp.eq.s32.totalorder %s35, 0
        // Predicated region
        $region37: #{tpu_custom_call.1} parent=27 // pred_check
          %p314 = pneg %p313
        $region38: #{tpu_custom_call.1} parent=27 // pred_check_branch
          %316 = sbr.rel (%p314) target = $region40
        $region39: #{tpu_custom_call.1} parent=27 // pred_region
          %317 = vst [vmem:[%s294] sm:$0xf] 0.0
          %318 = vst [vmem:[%s301] sm:$0xf] 0.0
          %319 = vst [vmem:[%s308] sm:$0xf] 0.0
        $region40: #{tpu_custom_call.1} parent=27 // pred_fallthru
          _
        %v320 = vld [vmem:[%s260] sm:$0xff]
        %v321 = vld [vmem:[%s269] sm:$0xff]
        %v323 = vcombine.high %v320, %v320
        %vm325 = vcmask 1043456
        %v326 = vsel %vm325, %v320, -inf
        %v327 = vrot.slane %v326, 4
        %v328 = vmax.f32 %v326, %v327
        %v329 = vrot.slane %v328, 2
        %v330 = vmax.f32 %v328, %v329
        %v331 = vrot.slane %v330, 1
        %v332 = vmax.f32 %v330, %v331
        %v333 = vsel %vm325, %v323, -inf
        %v334 = vrot.slane %v333, 4
        %v335 = vmax.f32 %v333, %v334
        %v336 = vrot.slane %v335, 2
        %v337 = vmax.f32 %v335, %v336
        %v338 = vrot.slane %v337, 1
        %v339 = vmax.f32 %v337, %v338
        %v342 = vcombine.low %v332, %v339
        %v344 = vsub.f32 %v320, %v342
        %v345 = vmul.f32 %v344, 1.442695
        %v346 = vpow.pop %v345
        %v348 = vcombine.high %v346, %v346
        %v350 = vsel %vm325, %v346, 0.0
        %v351 = vrot.slane %v350, 4
        %v352 = vadd.f32 %v350, %v351
        %v353 = vrot.slane %v352, 2
        %v354 = vadd.f32 %v352, %v353
        %v355 = vrot.slane %v354, 1
        %v356 = vadd.f32 %v354, %v355
        %v357 = vsel %vm325, %v348, 0.0
        %v358 = vrot.slane %v357, 4
        %v359 = vadd.f32 %v357, %v358
        %v360 = vrot.slane %v359, 2
        %v361 = vadd.f32 %v359, %v360
        %v362 = vrot.slane %v361, 1
        %v363 = vadd.f32 %v361, %v362
        %v364 = vlog2.pop %v356
        %v365 = vmul.f32 %v364, 0.6931472
        %v366 = vlog2.pop %v363
        %v367 = vmul.f32 %v366, 0.6931472
        %v369 = vcombine.high %v321, %v321
        %v371 = vsel %vm325, %v321, 0.0
        %v372 = vrot.slane %v371, 4
        %v373 = vadd.f32 %v371, %v372
        %v374 = vrot.slane %v373, 2
        %v375 = vadd.f32 %v373, %v374
        %v376 = vrot.slane %v375, 1
        %v377 = vadd.f32 %v375, %v376
        %v378 = vsel %vm325, %v369, 0.0
        %v379 = vrot.slane %v378, 4
        %v380 = vadd.f32 %v378, %v379
        %v381 = vrot.slane %v380, 2
        %v382 = vadd.f32 %v380, %v381
        %v383 = vrot.slane %v382, 1
        %v384 = vadd.f32 %v382, %v383
        %v385 = vmul.f32 %v365, %v377
        %v386 = vmul.f32 %v367, %v384
        %v387 = vmul.f32 %v321, %v344
        %v389 = vcombine.high %v387, %v387
        %v391 = vsel %vm325, %v387, 0.0
        %v392 = vrot.slane %v391, 4
        %v393 = vadd.f32 %v391, %v392
        %v394 = vrot.slane %v393, 2
        %v395 = vadd.f32 %v393, %v394
        %v396 = vrot.slane %v395, 1
        %v397 = vadd.f32 %v395, %v396
        %v398 = vsel %vm325, %v389, 0.0
        %v399 = vrot.slane %v398, 4
        %v400 = vadd.f32 %v398, %v399
        %v401 = vrot.slane %v400, 2
        %v402 = vadd.f32 %v400, %v401
        %v403 = vrot.slane %v402, 1
        %v404 = vadd.f32 %v402, %v403
        %v405 = vsub.f32 %v385, %v397
        %v406 = vsub.f32 %v386, %v404
        %vm407 = vcmp.eq.f32.partialorder %v321, 1.0
        %v408 = vsel %vm407, 1, 0
        %v409 = vcvt.s32.f32 %v408
        %v410 = vmax.f32 %v320, 0.0
        %v411 = vmul.f32 %v320, %v321
        %v412 = vsub.f32 %v410, %v411
        %v413 = vand.u32 2147483647, %v320
        %v414 = vsub.f32 0.0, %v413
        %v415 = vmul.f32 %v414, 1.442695
        %v416 = vpow.pop %v415
        %v417 = vadd.f32 %v416, 1.0
        %v418 = vlog2.pop %v417
        %v419 = vmul.f32 %v418, 0.6931472
        %v420 = vadd.f32 %v412, %v419
        %v423 = vcombine.low %v405, %v406
        %v425 = vmul.f32 %v409, %v423
        %v427 = vrot.slane %v425, 4
        %v429 = vadd.f32 %v425, %v427
        %v430 = vadd.f32 %v429, 0.0
        %v432 = vrot.slane %v409, 4
        %v434 = vadd.f32 %v409, %v432
        %v435 = vadd.f32 %v434, 0.0
        %v437 = vrot.slane %v420, 4
        %v439 = vadd.f32 %v420, %v437
        %v440 = vadd.f32 %v439, 0.0
        %v441 = vld [vmem:[%s294] sm:$0xf]
        %v442 = vadd.f32 %v441, %v430
        %443 = vst [vmem:[%s294] sm:$0xf] %v442
        %v444 = vld [vmem:[%s301] sm:$0xf]
        %v445 = vadd.f32 %v444, %v435
        %446 = vst [vmem:[%s301] sm:$0xf] %v445
        %v447 = vld [vmem:[%s308] sm:$0xf]
        %v448 = vadd.f32 %v447, %v440
        %449 = vst [vmem:[%s308] sm:$0xf] %v448
        %s450 = sand.u32 %s117, 1
        %s451 = scalar_lea.sflag [#allocation4], %s450
        %s452 = sand.u32 %s117, 1
        %s453 = smul.addr %s452, 4
        %s454 = scalar_lea.vmem [#allocation7], %s453
        %s455 = sand.u32 %s28, 1
        %s456 = scalar_lea.sflag [#allocation9], %s455
        %s457 = sand.u32 %s145, 1
        %s458 = smul.addr %s457, 4
        %s459 = scalar_lea.vmem [#allocation8], %s458
        %s460 = sand.u32 %s28, 1
        %s461 = scalar_lea.sflag [#allocation9], %s460
        %s462 = sand.u32 %s173, 1
        %s463 = smul.addr %s462, 4
        %s464 = scalar_lea.vmem [#allocation10], %s463
        // Predicated region
        $region41: #{tpu_custom_call.1} parent=27 // pred_check
          %p465 = pneg %p127
        $region42: #{tpu_custom_call.1} parent=27 // pred_check_branch
          %467 = sbr.rel (%p465) target = $region44
        $region43: #{tpu_custom_call.1} parent=27 // pred_region
          %s469 = ssub.s32 64, 64
          %470 = vsyncadd %s451, %s469
          %s471 = sadd.s32 %s34, %s33
          %s472 = smul.addr %s471, 64
          %s473 = scalar_lea.hbm %s2, %s472
          %s475 = sshll.u32 %s454, 4
          %s476 = int_to_ptr.vmem [resolvable:$true] %s475
          %478 = dma.vmem_to_hbm [thread:$0]  %s476, 64, %s473, %s451
        $region44: #{tpu_custom_call.1} parent=27 // pred_fallthru
          _
        // Predicated region
        $region45: #{tpu_custom_call.1} parent=27 // pred_check
          %p479 = pneg %p155
        $region46: #{tpu_custom_call.1} parent=27 // pred_check_branch
          %481 = sbr.rel (%p479) target = $region48
        $region47: #{tpu_custom_call.1} parent=27 // pred_region
          %s483 = ssub.s32 64, 64
          %484 = vsyncadd %s456, %s483
          %s485 = sadd.s32 %s34, %s33
          %s486 = smul.addr %s485, 64
          %s487 = scalar_lea.hbm %s3, %s486
          %s489 = sshll.u32 %s459, 4
          %s490 = int_to_ptr.vmem [resolvable:$true] %s489
          %492 = dma.vmem_to_hbm [thread:$0]  %s490, 64, %s487, %s456
        $region48: #{tpu_custom_call.1} parent=27 // pred_fallthru
          _
        // Predicated region
        $region49: #{tpu_custom_call.1} parent=27 // pred_check
          %p493 = pneg %p183
        $region50: #{tpu_custom_call.1} parent=27 // pred_check_branch
          %495 = sbr.rel (%p493) target = $region52
        $region51: #{tpu_custom_call.1} parent=27 // pred_region
          %s497 = ssub.s32 64, 64
          %498 = vsyncadd %s461, %s497
          %s499 = sadd.s32 %s34, %s33
          %s500 = smul.addr %s499, 64
          %s501 = scalar_lea.hbm %s4, %s500
          %s503 = sshll.u32 %s464, 4
          %s504 = int_to_ptr.vmem [resolvable:$true] %s503
          %506 = dma.vmem_to_hbm [thread:$0]  %s504, 64, %s501, %s461
        $region52: #{tpu_custom_call.1} parent=27 // pred_fallthru
          _
      $region28: #{tpu_custom_call.1} parent=5 // pred_fallthru
        _
      %p507 = scmp.le.s32.totalorder 2, %s23
      // Predicated region
      $region53: #{tpu_custom_call.1} parent=5 // pred_check
        %p508 = pneg %p507
      $region54: #{tpu_custom_call.1} parent=5 // pred_check_branch
        %510 = sbr.rel (%p508) target = $region56
      $region55: #{tpu_custom_call.1} parent=5 // pred_region
        %s511 = ssub.s32 %s23, 2
        // Predicated region
        $region57: #{tpu_custom_call.1} parent=55 // pred_check
          %p512 = pneg %p133
        $region58: #{tpu_custom_call.1} parent=55 // pred_check_branch
          %514 = sbr.rel (%p512) target = $region60
        $region59: #{tpu_custom_call.1} parent=55 // pred_region
          %s515 = sand.u32 %s118, 1
          %s516 = scalar_lea.sflag [#allocation4], %s515
          %s517 = sand.u32 %s118, 1
          %s518 = smul.addr %s517, 4
          %s519 = scalar_lea.vmem [#allocation7], %s518
          %520 = dma.done %s516, 64
        $region60: #{tpu_custom_call.1} parent=55 // pred_fallthru
          _
        // Predicated region
        $region61: #{tpu_custom_call.1} parent=55 // pred_check
          %p521 = pneg %p161
        $region62: #{tpu_custom_call.1} parent=55 // pred_check_branch
          %523 = sbr.rel (%p521) target = $region64
        $region63: #{tpu_custom_call.1} parent=55 // pred_region
          %s524 = sand.u32 %s29, 1
          %s525 = scalar_lea.sflag [#allocation9], %s524
          %s526 = sand.u32 %s146, 1
          %s527 = smul.addr %s526, 4
          %s528 = scalar_lea.vmem [#allocation8], %s527
          %529 = dma.done %s525, 64
        $region64: #{tpu_custom_call.1} parent=55 // pred_fallthru
          _
        // Predicated region
        $region65: #{tpu_custom_call.1} parent=55 // pred_check
          %p530 = pneg %p189
        $region66: #{tpu_custom_call.1} parent=55 // pred_check_branch
          %532 = sbr.rel (%p530) target = $region68
        $region67: #{tpu_custom_call.1} parent=55 // pred_region
          %s533 = sand.u32 %s29, 1
          %s534 = scalar_lea.sflag [#allocation9], %s533
          %s535 = sand.u32 %s174, 1
          %s536 = smul.addr %s535, 4
          %s537 = scalar_lea.vmem [#allocation10], %s536
          %538 = dma.done %s534, 64
        $region68: #{tpu_custom_call.1} parent=55 // pred_fallthru
          _
      $region56: #{tpu_custom_call.1} parent=5 // pred_fallthru
        _
    $region6: #{tpu_custom_call.1} parent=1 // loop_footer
      %s27 = sadd.s32 1, %s23
    $region7: #{tpu_custom_call.1} parent=1 // loop_footer_branch
      %22 = sbr.rel target = $region3
    $region8: #{tpu_custom_call.1} parent=1 // loop_exit
      _
    %539 = vsyncpa [#allocation3], 1
    %s540 = scalar_lea.sflag [#allocation3], 1
    %541 = vsyncpa %s540, 1
    %542 = vsyncpa [#allocation6], 1
    %s543 = scalar_lea.sflag [#allocation6], 1
    %544 = vsyncpa %s543, 1
    %545 = vsyncpa [#allocation4], 1
    %s546 = scalar_lea.sflag [#allocation4], 1
    %547 = vsyncpa %s546, 1
    %548 = vsyncpa [#allocation9], 1
    %s549 = scalar_lea.sflag [#allocation9], 1
    %550 = vsyncpa %s549, 1

</llo_original>
